<compile_context>
chip_gen: v5e
topology: v5e:2x2
jax: 0.10.0
libtpu: 0.0.40
codegen_flags: <defaults>
</compile_context>

<pallas_src>
import functools

import jax
import jax.numpy as jnp
import numpy as np
from jax.experimental import pallas as pl
from jax.experimental.pallas import tpu as pltpu


_LANE = 128      # lane width (last dim granule)
_SUBLANE = 8     # sublane granule (second-to-last dim, f32)


def _round_up(x, n):
    return ((x + n - 1) // n) * n


def _ceil_div(a, b):
    return -(-a // b)


# ---------------------------------------------------------------------------
# Tiling / VMEM budgeting
# ---------------------------------------------------------------------------
def _feature_tiles(m, k):
    """Choose (m_pad, k_pad, tk, n_k) for an (m, k) f32 feature matrix."""
    m_pad = _round_up(m, _SUBLANE)
    k_lane = _round_up(k, _LANE)

    # Target K-tile keyed on m_pad so the double-buffered f32 feature slab
    # stays around 16 MiB (well inside the 32 MiB scoped-VMEM default).
    if m_pad <= 128:
        tk_target = 16384
    elif m_pad <= 256:
        tk_target = 8192
    elif m_pad <= 512:
        tk_target = 4096
    elif m_pad <= 1024:
        tk_target = 2048
    else:
        tk_target = 1024

    if k_lane <= tk_target:
        tk, n_k = k_lane, 1
    else:
        n_k = _ceil_div(k_lane, tk_target)
        tk = _round_up(_ceil_div(k_lane, n_k), _LANE)   # minimize zero-column waste
        n_k = _ceil_div(k_lane, tk)
    k_pad = n_k * tk
    return m_pad, k_pad, tk, n_k


def _vmem_limit_bytes(m_pad, tk, *, fused):
    feat = 2 * m_pad * tk * 4                      # double-buffered f32 feature tiles
    gram = m_pad * m_pad * 4
    need = feat + (3 if fused else 2) * gram       # target dbl-buf + acc / out buffers
    return int(min(max(32 << 20, need + (2 << 20)), 56 << 20))


def _prep_features(x):
    """NCHW -> (m, k) f32 features, padded only if not already tile-aligned."""
    a, b, c, d = x.shape
    m, k = a * b, c * d
    m_pad, k_pad, tk, n_k = _feature_tiles(m, k)
    feats = x.reshape(m, k)
    if (m_pad, k_pad) != (m, k):
        # zero rows/cols contribute nothing to the gram matrix
        feats = jnp.pad(feats, ((0, m_pad - m), (0, k_pad - k)))
    return feats, m, k, m_pad, k_pad, tk, n_k


# ---------------------------------------------------------------------------
# Kernels
# ---------------------------------------------------------------------------
def _gram_kernel(feat_ref, g_ref, *, inv_denom):
    """Accumulate G += F_tile @ F_tile^T directly into the resident output block."""
    ki = pl.program_id(0)

    @pl.when(ki == 0)
    def _():
        g_ref[...] = jnp.zeros_like(g_ref)

    # in-kernel bf16 cast feeds the MXU's native path; accumulation stays f32
    f = feat_ref[...].astype(jnp.bfloat16)
    g_ref[...] += jax.lax.dot_general(
        f, f,
        dimension_numbers=(((1,), (1,)), ((), ())),   # contract dim 1 of both: no transpose
        preferred_element_type=jnp.float32,
    )

    @pl.when(ki == pl.num_programs(0) - 1)
    def _():
        g_ref[...] = g_ref[...] * inv_denom


def _style_loss_kernel(feat_ref, target_ref, loss_ref, acc_ref, *,
                       inv_denom, inv_mm):
    """Fused: gram(input) accumulated over K tiles -> MSE vs. target gram."""
    ki = pl.program_id(0)

    @pl.when(ki == 0)
    def _():
        acc_ref[...] = jnp.zeros_like(acc_ref)

    f = feat_ref[...].astype(jnp.bfloat16)
    acc_ref[...] += jax.lax.dot_general(
        f, f,
        dimension_numbers=(((1,), (1,)), ((), ())),
        preferred_element_type=jnp.float32,
    )

    @pl.when(ki == pl.num_programs(0) - 1)
    def _():
        diff = acc_ref[...] * inv_denom - target_ref[...]   # padded region: 0 - 0 = 0
        row = jnp.sum(diff * diff, axis=-1)                  # two-stage reduction
        loss_ref[0, 0] = jnp.sum(row) * inv_mm                # mean over original m*m


# ---------------------------------------------------------------------------
# Wrappers
# ---------------------------------------------------------------------------
def gram_matrix_pallas(x):
    """G = (X_flat @ X_flat.T) / (a*b*c*d), X_flat = x.reshape(a*b, c*d)."""
    a, b, c, d = x.shape
    feats, m, k, m_pad, k_pad, tk, n_k = _prep_features(x)
    inv_denom = 1.0 / float(a * b * c * d)

    g_pad = pl.pallas_call(
        functools.partial(_gram_kernel, inv_denom=inv_denom),
        out_shape=jax.ShapeDtypeStruct((m_pad, m_pad), jnp.float32),
        grid_spec=pltpu.PrefetchScalarGridSpec(
            num_scalar_prefetch=0,
            grid=(n_k,),
            in_specs=[pl.BlockSpec((m_pad, tk), lambda ki: (0, ki))],
            out_specs=pl.BlockSpec((m_pad, m_pad), lambda ki: (0, 0)),
        ),
        compiler_params=pltpu.CompilerParams(
            dimension_semantics=("arbitrary",),
            vmem_limit_bytes=_vmem_limit_bytes(m_pad, tk, fused=False)),
        cost_estimate=pl.CostEstimate(
            flops=2 * m_pad * m_pad * k_pad,
            transcendentals=0,
            bytes_accessed=m_pad * k_pad * 4 + m_pad * m_pad * 4),
    )(feats)
    return g_pad[:m, :m] if m_pad != m else g_pad


def style_loss_pallas(x, target_gram):
    """Scalar MSE(gram(x), target_gram), fused in a single K-tiled kernel."""
    a, b, c, d = x.shape
    feats, m, k, m_pad, k_pad, tk, n_k = _prep_features(x)
    inv_denom = 1.0 / float(a * b * c * d)
    inv_mm = 1.0 / float(m * m)

    target = target_gram.astype(jnp.float32)
    if m_pad != m:
        target = jnp.pad(target, ((0, m_pad - m), (0, m_pad - m)))

    loss = pl.pallas_call(
        functools.partial(_style_loss_kernel,
                          inv_denom=inv_denom, inv_mm=inv_mm),
        out_shape=jax.ShapeDtypeStruct((1, 1), jnp.float32),
        grid_spec=pltpu.PrefetchScalarGridSpec(
            num_scalar_prefetch=0,
            grid=(n_k,),
            in_specs=[
                pl.BlockSpec((m_pad, tk), lambda ki: (0, ki)),
                pl.BlockSpec((m_pad, m_pad), lambda ki: (0, 0)),
            ],
            out_specs=pl.BlockSpec(memory_space=pltpu.MemorySpace.SMEM),
            scratch_shapes=[pltpu.VMEM((m_pad, m_pad), jnp.float32)],
        ),
        compiler_params=pltpu.CompilerParams(
            dimension_semantics=("arbitrary",),
            vmem_limit_bytes=_vmem_limit_bytes(m_pad, tk, fused=True)),
        cost_estimate=pl.CostEstimate(
            flops=2 * m_pad * m_pad * k_pad + 3 * m_pad * m_pad,
            transcendentals=0,
            bytes_accessed=m_pad * k_pad * 4 + m_pad * m_pad * 4 + 4),
    )(feats, target)
    return loss[0, 0]


class StyleLoss:
    """JAX/Pallas port of the PyTorch StyleLoss module (forward pass)."""

    def __init__(self, target_feature):
        # target gram is fixed ("detached") at construction time
        self.target = jax.lax.stop_gradient(gram_matrix_pallas(target_feature))
        self.loss = None

    def __call__(self, x):
        self.loss = style_loss_pallas(x, self.target)
        return x  # identity pass-through, same as the PyTorch module


# ---------------------------------------------------------------------------
# Reference + smoke test
# ---------------------------------------------------------------------------
def _bf16_round(x):
    # the kernel casts features to bf16 right before the MXU dot
    return np.asarray(jnp.asarray(x).astype(jnp.bfloat16).astype(jnp.float32))


def _ref_gram(x):
    a, b, c, d = x.shape
    f = _bf16_round(x).reshape(a * b, c * d).astype(np.float32)
    return (f @ f.T) / float(a * b * c * d)


if __name__ == "__main__":
    key = jax.random.PRNGKey(0)
    k_tgt, k_in = jax.random.split(key)

    # NCHW, small shapes: batch=2, channels=4, spatial=16
    target_feature = jax.random.normal(k_tgt, (2, 4, 16, 16), dtype=jnp.float32)
    x = jax.random.normal(k_in, (2, 4, 16, 16), dtype=jnp.float32)

    module = StyleLoss(target_feature)
    out = module(x)
    out = jax.block_until_ready(out)
    loss = jax.block_until_ready(module.loss)
    g_kernel = jax.block_until_ready(gram_matrix_pallas(x))

    # correctness check against a pure-numpy reference (bf16 feature precision)
    g_ref = _ref_gram(x)
    t_ref = _ref_gram(target_feature)
    loss_ref = np.mean((g_ref - t_ref) ** 2)

    assert np.allclose(np.asarray(out), np.asarray(x)), "forward must return input"
    assert np.allclose(np.asarray(g_kernel), g_ref, rtol=1e-3, atol=1e-5), (
        "gram mismatch", float(np.max(np.abs(np.asarray(g_kernel) - g_ref))))
    assert np.allclose(float(loss), float(loss_ref), rtol=1e-3, atol=1e-5), (
        float(loss), float(loss_ref))

    print("KERNEL_OK")
</pallas_src>

<mosaic_0001>
module attributes {stable_mosaic.version = 11 : i64} {
  func.func @_gram_kernel(%arg0: i32, %arg1: memref<8x256xf32, #tpu.memory_space<vmem>>, %arg2: memref<8x8xf32, #tpu.memory_space<vmem>>) attributes {dimension_semantics = [#tpu.dimension_semantics<arbitrary>], iteration_bounds = array<i64: 1>, scalar_prefetch = 0 : i64, scratch_operands = 0 : i64, tpu.core_type = #tpu.core_type<tc>, window_params = [{transform_indices = @transform_0, window_bounds = array<i64: 8, 256>}, {pipeline_mode = #tpu.pipeline_mode<synchronous>, transform_indices = @transform_1, window_bounds = array<i64: 8, 8>}]} {
    %c0_i32 = arith.constant 0 : i32
    %0 = arith.cmpi eq, %arg0, %c0_i32 : i32
    %1 = arith.extui %0 : i1 to i32
    %c0_i32_0 = arith.constant 0 : i32
    %2 = arith.cmpi ne, %1, %c0_i32_0 : i32
    scf.if %2 {
      %cst_8 = arith.constant 0.000000e+00 : f32
      %12 = vector.broadcast %cst_8 : f32 to vector<8x8xf32>
      %c0_9 = arith.constant 0 : index
      %c0_10 = arith.constant 0 : index
      %13 = vector.load %arg2[%c0_9, %c0_10] : memref<8x8xf32, #tpu.memory_space<vmem>>, vector<8x8xf32>
      tpu.vector_store %arg2[%c0_9, %c0_10], %12 {strides = array<i32>} : memref<8x8xf32, #tpu.memory_space<vmem>>, vector<8x8xf32>,
    } else {
    }
    %c0 = arith.constant 0 : index
    %c0_1 = arith.constant 0 : index
    %3 = vector.load %arg1[%c0, %c0_1] : memref<8x256xf32, #tpu.memory_space<vmem>>, vector<8x256xf32>
    %4 = arith.truncf %3 : vector<8x256xf32> to vector<8x256xbf16>
    %c0_2 = arith.constant 0 : index
    %c0_3 = arith.constant 0 : index
    %5 = vector.load %arg2[%c0_2, %c0_3] : memref<8x8xf32, #tpu.memory_space<vmem>>, vector<8x8xf32>
    %cst = arith.constant dense<0.000000e+00> : vector<8x8xf32>
    %6 = tpu.matmul %4, %4, %cst {dimension_numbers = #tpu.dot_dimension_numbers<[1], [1], [0], [0], [0, 0, 1, 0], [], []>} : vector<8x256xbf16>, vector<8x256xbf16>, vector<8x8xf32> -> vector<8x8xf32>
    %7 = arith.addf %5, %6 : vector<8x8xf32>
    %c0_4 = arith.constant 0 : index
    %c0_5 = arith.constant 0 : index
    %8 = vector.load %arg2[%c0_4, %c0_5] : memref<8x8xf32, #tpu.memory_space<vmem>>, vector<8x8xf32>
    tpu.vector_store %arg2[%c0_4, %c0_5], %7 {strides = array<i32>} : memref<8x8xf32, #tpu.memory_space<vmem>>, vector<8x8xf32>,
    %c0_i32_6 = arith.constant 0 : i32
    %9 = arith.cmpi eq, %arg0, %c0_i32_6 : i32
    %10 = arith.extui %9 : i1 to i32
    %c0_i32_7 = arith.constant 0 : i32
    %11 = arith.cmpi ne, %10, %c0_i32_7 : i32
    scf.if %11 {
      %c0_8 = arith.constant 0 : index
      %c0_9 = arith.constant 0 : index
      %12 = vector.load %arg2[%c0_8, %c0_9] : memref<8x8xf32, #tpu.memory_space<vmem>>, vector<8x8xf32>
      %cst_10 = arith.constant 4.8828125E-4 : f32
      %13 = vector.broadcast %cst_10 : f32 to vector<8x8xf32>
      %14 = arith.mulf %12, %13 : vector<8x8xf32>
      %c0_11 = arith.constant 0 : index
      %c0_12 = arith.constant 0 : index
      %15 = vector.load %arg2[%c0_11, %c0_12] : memref<8x8xf32, #tpu.memory_space<vmem>>, vector<8x8xf32>
      tpu.vector_store %arg2[%c0_11, %c0_12], %14 {strides = array<i32>} : memref<8x8xf32, #tpu.memory_space<vmem>>, vector<8x8xf32>,
    } else {
    }
    return
  }
  func.func @transform_0(%arg0: i32) -> (i32, i32) {
    %c0_i32 = arith.constant 0 : i32
    %c0_i32_0 = arith.constant 0 : i32
    return %c0_i32, %arg0 : i32, i32
  }
  func.func @transform_1(%arg0: i32) -> (i32, i32) {
    %c0_i32 = arith.constant 0 : i32
    %c0_i32_0 = arith.constant 0 : i32
    %c0_i32_1 = arith.constant 0 : i32
    return %c0_i32, %c0_i32_0 : i32, i32
  }
}

</mosaic_0001>

<llo_original>
// kernel: tpu_custom_call.1
$region0: #{tpu_custom_call.1}
  #allocation0 [shape = 'u32[]', space=smem, size = 0x4, offset = 0x4, fixed_abs, tag = 'smem constant byte address 0x4 - core index']
  #allocation1 [shape = 'u32[72,128]{1,0:T(1,128)}', space=vmem, size = 0x9000, scoped, tag = 'internal scratch']
  %s0 = inlined_call_operand.hbm [shape: f32[8,256], index: 0, kind: input, shape index: {}]
  %s1 = inlined_call_operand.hbm [shape: f32[8,8], index: 1, kind: output, shape index: {}]
  %s2 = sld [smem:[#allocation0]]
  $region26: #{tpu_custom_call.1} parent=0
    _
  %s4 = ssub.s32 1, %s2
  %s5 = scalar_select 0, %s4, %s2
  $region1: #{tpu_custom_call.1} parent=0
    #allocation2 [shape = 'u8[8192]{0}', space=vmem, size = 0x2000, scoped, tag = 'input window, operand 0, single buffered']
    #allocation3 [shape = 's32[1]{0}', space=sflag, size = 0x4, scoped, tag = 'scoped memory for tpu_custom_call.1']
    #allocation4 [shape = 's32[1]{0}', space=sflag, size = 0x4, scoped, tag = 'scoped memory for tpu_custom_call.1']
    #allocation5 [shape = 'u8[4096]{0}', space=vmem, size = 0x1000, scoped, tag = 'output window, operand 0, single buffered']
    %6 = vsyncpa [#allocation3], 0
    %7 = vsyncpa [#allocation4], 0
    // Predicated region
    $region2: #{tpu_custom_call.1} parent=1 // pred_check
      _
    $region3: #{tpu_custom_call.1} parent=1 // pred_check_branch
      %9 = sbr.rel (0) target = $region5
    $region4: #{tpu_custom_call.1} parent=1 // pred_region
      %11 = vsyncadd [#allocation3], 0
      %s13 = sshll.u32 %s0, 4
      %s14 = int_to_ptr.hbm [resolvable:$true] %s13
      %s15 = sshll.u32 [#allocation2], 4
      %s16 = int_to_ptr.vmem [resolvable:$true] %s15
      %18 = dma.hbm_to_vmem [thread:$0]  %s14, 256, %s16, [#allocation3]
    $region5: #{tpu_custom_call.1} parent=1 // pred_fallthru
      _
    // Predicated region
    $region6: #{tpu_custom_call.1} parent=1 // pred_check
      _
    $region7: #{tpu_custom_call.1} parent=1 // pred_check_branch
      %20 = sbr.rel (0) target = $region9
    $region8: #{tpu_custom_call.1} parent=1 // pred_region
      %22 = dma.done [#allocation3], 256
    $region9: #{tpu_custom_call.1} parent=1 // pred_fallthru
      _
    %p24 = scmp.eq.s32.totalorder 0, 0
    // Predicated region
    $region10: #{tpu_custom_call.1} parent=1 // pred_check
      %p25 = pneg %p24
    $region11: #{tpu_custom_call.1} parent=1 // pred_check_branch
      %27 = sbr.rel (%p25) target = $region13
    $region12: #{tpu_custom_call.1} parent=1 // pred_region
      %vm28 = vcmask 64512
      %29 = vst.msk [vmem:[#allocation5] sm:$0xff] %vm28, 0.0
    $region13: #{tpu_custom_call.1} parent=1 // pred_fallthru
      _
    %v30 = vld [vmem:[#allocation2] sm:$0xff]
    %v31 = vld [vmem:[#allocation2 + $0x8] sm:$0xff]
    %v32 = vpack.c.bf16 %v30, %v30
    %v33 = vpack.c.bf16 %v31, %v31
    %v34 = vld [vmem:[#allocation5] sm:$0xff]
    %35 = vmatpush.bf16.xpose.msra.mxu0 0
    %36 = vmatpush.bf16.xpose.msra.mxu0 0
    %37 = vmatpush.bf16.xpose.msra.mxu0 0
    %38 = vmatpush.bf16.xpose.msra.mxu0 0
    %39 = vmatpush.bf16.xpose.msra.mxu0 0
    %40 = vmatpush.bf16.xpose.msra.mxu0 0
    %41 = vmatpush.bf16.xpose.msra.mxu0 0
    %42 = vmatpush.bf16.xpose.msra.mxu0 %v32
    %43 = vmatmul.bf16.gmra.mxu0 %v32
    %v44 = vpop.f32.mrf.mxu0
    %v45 = vadd.f32 0.0, %v44
    %v46 = vpop.f32.mrf.mxu0
    %47 = vdwg.mxu0
    %48 = vmatpush.bf16.xpose.msra.mxu0 0
    %49 = vmatpush.bf16.xpose.msra.mxu0 0
    %50 = vmatpush.bf16.xpose.msra.mxu0 0
    %51 = vmatpush.bf16.xpose.msra.mxu0 0
    %52 = vmatpush.bf16.xpose.msra.mxu0 0
    %53 = vmatpush.bf16.xpose.msra.mxu0 0
    %54 = vmatpush.bf16.xpose.msra.mxu0 0
    %55 = vmatpush.bf16.xpose.msra.mxu0 %v33
    %56 = vmatmul.bf16.gmra.mxu0 %v33
    %v57 = vpop.f32.mrf.mxu0
    %v58 = vadd.f32 %v45, %v57
    %v59 = vpop.f32.mrf.mxu0
    %60 = vdwg.mxu0
    %v61 = vadd.f32 %v34, %v58
    %vm62 = vcmask 64512
    %63 = vst.msk [vmem:[#allocation5] sm:$0xff] %vm62, %v61
    // Predicated region
    $region14: #{tpu_custom_call.1} parent=1 // pred_check
      %p64 = pneg %p24
    $region15: #{tpu_custom_call.1} parent=1 // pred_check_branch
      %66 = sbr.rel (%p64) target = $region17
    $region16: #{tpu_custom_call.1} parent=1 // pred_region
      %v67 = vld [vmem:[#allocation5] sm:$0xff]
      %v68 = vmul.f32 %v67, 0.00048828125
      %69 = vst.msk [vmem:[#allocation5] sm:$0xff] %vm62, %v68
    $region17: #{tpu_custom_call.1} parent=1 // pred_fallthru
      _
    // Predicated region
    $region18: #{tpu_custom_call.1} parent=1 // pred_check
      _
    $region19: #{tpu_custom_call.1} parent=1 // pred_check_branch
      %71 = sbr.rel (0) target = $region21
    $region20: #{tpu_custom_call.1} parent=1 // pred_region
      %73 = vsyncadd [#allocation4], 0
      %s75 = sshll.u32 [#allocation5], 4
      %s76 = int_to_ptr.vmem [resolvable:$true] %s75
      %s77 = sshll.u32 %s1, 4
      %s78 = int_to_ptr.hbm [resolvable:$true] %s77
      %80 = dma.vmem_to_hbm [thread:$0]  %s76, 128, %s78, [#allocation4]
    $region21: #{tpu_custom_call.1} parent=1 // pred_fallthru
      _
    // Predicated region
    $region22: #{tpu_custom_call.1} parent=1 // pred_check
      _
    $region23: #{tpu_custom_call.1} parent=1 // pred_check_branch
      %82 = sbr.rel (0) target = $region25
    $region24: #{tpu_custom_call.1} parent=1 // pred_region
      %84 = dma.done [#allocation4], 128
    $region25: #{tpu_custom_call.1} parent=1 // pred_fallthru
      _
    %85 = vsyncpa [#allocation3], 1
    %86 = vsyncpa [#allocation4], 1

</llo_original>
